<compile_context>
chip_gen: v5e
topology: v5e:2x2
jax: 0.10.0
libtpu: 0.0.40
codegen_flags: <defaults>
</compile_context>

<pallas_src>
import jax
import jax.numpy as jnp
from jax.experimental import pallas as pl
from jax.experimental.pallas import tpu as pltpu

_NEG_PAD = -1.0e30     # bias value for padded (fake) feature columns
_SMALL_BATCH = 256     # below this, skip the grid entirely (single VMEM call)


def _round_up(x, m):
    return ((x + m - 1) // m) * m


def prepare_params(weight, bias, *, use_bf16_matmul=False):
    """Pad (+ transpose) the Linear parameters once; cache and reuse per call.

    weight: (D, D) in PyTorch (out, in) layout.  Returns (W^T padded to
    (Dp, Dp), bias padded to (1, Dp) with -1e30 in the fake columns).
    """
    d_out, d_in = weight.shape
    assert d_out == d_in, "code_generate uses a square Linear(in_dim, in_dim)"
    D = d_in
    Dp = _round_up(max(D, 128), 128)                 # lane-dense feature dim
    w_dtype = jnp.bfloat16 if use_bf16_matmul else jnp.float32
    # Fused transpose + pad: kernel computes logits = z @ W^T directly.
    wt = jnp.pad(weight.astype(w_dtype).T, ((0, Dp - D), (0, Dp - D)))
    bp = jnp.pad(bias.astype(jnp.float32), (0, Dp - D),
                 constant_values=_NEG_PAD).reshape(1, Dp)
    return wt, bp


def _linear_softmax_kernel(z_ref, wt_ref, b_ref, o_ref):
    # z_ref : (TB, Dp)  f32 activations
    # wt_ref: (Dp, Dp)  pre-transposed weight (f32 or bf16)
    # b_ref : (1,  Dp)  f32 bias; padded columns hold -1e30
    # o_ref : (TB, Dp)  softmax(z @ W^T + b, axis=1)
    z = z_ref[...]
    wt = wt_ref[...]
    if z.dtype != wt.dtype:
        z = z.astype(wt.dtype)                       # bf16 MXU path; acc stays f32
    logits = jnp.dot(z, wt, preferred_element_type=jnp.float32) + b_ref[...]

    # Numerically stable softmax along the feature axis.
    m = jnp.max(logits, axis=1, keepdims=True)
    e = jnp.exp(logits - m)                          # padded cols -> exp(-1e30) == 0
    s = jnp.sum(e, axis=1, keepdims=True)
    inv = pl.reciprocal(s, approx=True)              # EUP vrcp (free slot)
    inv = inv * (2.0 - s * inv)                      # one Newton step -> ~f32 accuracy
    o_ref[...] = (e * inv).astype(o_ref.dtype)       # single fused epilogue store


def code_generate_forward(z, weight=None, bias=None, *, prepared=None,
                          batch_tile=512, z_buffers=None,
                          use_bf16_matmul=False, out_dtype=jnp.float32):
    """z: (B, D).  Either pass (weight, bias) in PyTorch layout, or a cached
    `prepared = prepare_params(weight, bias)` to skip the per-call pad/transpose."""
    B, D = z.shape
    if prepared is None:
        if weight is None or bias is None:
            raise ValueError("pass (weight, bias) or prepared=prepare_params(...)")
        prepared = prepare_params(weight, bias, use_bf16_matmul=use_bf16_matmul)
    wt, bp = prepared
    Dp = wt.shape[0]
    assert wt.shape == (Dp, Dp) and bp.shape == (1, Dp) and Dp >= D

    f32 = jnp.float32
    out_dtype = jnp.dtype(out_dtype)
    Bp = _round_up(max(B, 8), 8)
    batch_tile = _round_up(max(batch_tile, 128), 128)

    if Bp <= _SMALL_BATCH:
        tb = Bg = Bp
        grid = None
    else:
        # Keep >= 2 grid steps so the "parallel" batch axis can actually use
        # both TensorCores on v7x; 256/512 are multiples of the 256-deep MXU.
        tb = batch_tile if Bp > batch_tile else min(batch_tile, 256)
        Bg = _round_up(Bp, tb)
        grid = (Bg // tb,)

    # Pad activations ONCE, straight to the final (Bg, Dp) shape.
    zp = jnp.pad(z.astype(f32), ((0, Bg - B), (0, Dp - D)))

    w_bytes = wt.size * wt.dtype.itemsize
    z_bufs = 1 if grid is None else (z_buffers if z_buffers is not None else 2)
    o_bufs = 1 if grid is None else 2
    raw_vmem = (4 * tb * Dp * z_bufs                       # z tiles
                + out_dtype.itemsize * tb * Dp * o_bufs    # out tiles
                + w_bytes + 4 * Dp                         # resident weight + bias
                + 4 * tb * Dp * 4)                         # logits/exp temporaries
    if raw_vmem > (56 << 20):
        # TODO(synk): add a D-tiled variant (contraction-axis grid + f32
        # accumulator scratch + two-pass/online softmax) for weights too large
        # to stay resident in VMEM (~3k f32 features on v7x's 64 MiB/TC).
        raise NotImplementedError(
            "resident-weight design limit exceeded; D-tiled variant not implemented")
    vmem_limit = int(min(64 << 20, max(32 << 20, 2 * raw_vmem)))

    cost = pl.CostEstimate(
        flops=2 * Bg * Dp * Dp,
        transcendentals=Bg * Dp,
        bytes_accessed=(4 + out_dtype.itemsize) * Bg * Dp + w_bytes + 4 * Dp,
    )

    vmem_full = pl.BlockSpec(memory_space=pltpu.MemorySpace.VMEM)
    out_shape = jax.ShapeDtypeStruct((Bg, Dp), out_dtype)

    if grid is None:
        # Tiny problem: single step, everything resident in VMEM, no grid.
        out_p = pl.pallas_call(
            _linear_softmax_kernel,
            out_shape=out_shape,
            in_specs=[vmem_full, vmem_full, vmem_full],
            out_specs=vmem_full,
            compiler_params=pltpu.CompilerParams(vmem_limit_bytes=vmem_limit),
            cost_estimate=cost,
        )(zp, wt, bp)
    else:
        # Batch-tiled path: z/out pipelined over the batch axis ("parallel",
        # sharded across TensorCores on v7x); weight + bias are whole-array
        # VMEM residents (single copy, not double-buffered).
        if z_buffers is None:
            z_spec = pl.BlockSpec((tb, Dp), lambda i: (i, 0))
        else:   # e.g. z_buffers=3 on v7x to hide fixed per-step latency
            z_spec = pl.BlockSpec((tb, Dp), lambda i: (i, 0),
                                  pipeline_mode=pl.Buffered(z_buffers))
        out_p = pl.pallas_call(
            _linear_softmax_kernel,
            out_shape=out_shape,
            grid=grid,
            in_specs=[z_spec, vmem_full, vmem_full],
            out_specs=pl.BlockSpec((tb, Dp), lambda i: (i, 0)),
            compiler_params=pltpu.CompilerParams(
                dimension_semantics=("parallel",),
                vmem_limit_bytes=vmem_limit),
            cost_estimate=cost,
        )(zp, wt, bp)

    return out_p[:B, :D]


if __name__ == "__main__":
    key = jax.random.PRNGKey(0)
    k_z, k_w, k_b, k_z2 = jax.random.split(key, 4)

    B, D = 8, 32  # small shapes: batch=8, in_dim=32

    # Deterministic parameter init (mimic nn.Linear's uniform(-1/sqrt(D), 1/sqrt(D)))
    bound = 1.0 / jnp.sqrt(jnp.float32(D))
    weight = jax.random.uniform(k_w, (D, D), jnp.float32, minval=-bound, maxval=bound)
    bias = jax.random.uniform(k_b, (D,), jnp.float32, minval=-bound, maxval=bound)

    # Pad + transpose the parameters once; reuse across forward calls.
    prepared = prepare_params(weight, bias)

    # --- small / no-grid path -------------------------------------------------
    z = jax.random.normal(k_z, (B, D), jnp.float32)
    out = jax.block_until_ready(code_generate_forward(z, prepared=prepared))
    ref = jax.nn.softmax(z @ weight.T + bias, axis=1)
    assert out.shape == (B, D), "wrong output shape"
    assert jnp.allclose(out, ref, atol=2e-5, rtol=2e-5), "mismatch vs reference (small path)"
    assert jnp.allclose(jnp.sum(out, axis=1), 1.0, atol=1e-5), "softmax rows must sum to 1"

    # --- batch-tiled / grid path (resident W + parallel batch grid) -----------
    B2 = 320
    z2 = jax.random.normal(k_z2, (B2, D), jnp.float32)
    out2 = jax.block_until_ready(code_generate_forward(z2, prepared=prepared))
    ref2 = jax.nn.softmax(z2 @ weight.T + bias, axis=1)
    assert out2.shape == (B2, D), "wrong output shape (grid path)"
    assert jnp.allclose(out2, ref2, atol=2e-5, rtol=2e-5), "mismatch vs reference (grid path)"

    print("KERNEL_OK")
</pallas_src>

<mosaic_0001>
module attributes {stable_mosaic.version = 11 : i64} {
  func.func @_linear_softmax_kernel(%arg0: memref<8x128xf32, #tpu.memory_space<vmem>>, %arg1: memref<128x128xf32, #tpu.memory_space<vmem>>, %arg2: memref<1x128xf32, #tpu.memory_space<vmem>>, %arg3: memref<8x128xf32, #tpu.memory_space<vmem>>) attributes {dimension_semantics = [], scalar_prefetch = 0 : i64, scratch_operands = 0 : i64, tpu.core_type = #tpu.core_type<tc>} {
    %c0 = arith.constant 0 : index
    %c0_0 = arith.constant 0 : index
    %0 = vector.load %arg0[%c0, %c0_0] : memref<8x128xf32, #tpu.memory_space<vmem>>, vector<8x128xf32>
    %c0_1 = arith.constant 0 : index
    %c0_2 = arith.constant 0 : index
    %1 = vector.load %arg1[%c0_1, %c0_2] : memref<128x128xf32, #tpu.memory_space<vmem>>, vector<128x128xf32>
    %cst = arith.constant dense<0.000000e+00> : vector<8x128xf32>
    %2 = tpu.matmul %0, %1, %cst {dimension_numbers = #tpu.dot_dimension_numbers<[1], [0], [0], [1], [0, 0, 1, 1], [], []>} : vector<8x128xf32>, vector<128x128xf32>, vector<8x128xf32> -> vector<8x128xf32>
    %c0_3 = arith.constant 0 : index
    %c0_4 = arith.constant 0 : index
    %3 = vector.load %arg2[%c0_3, %c0_4] : memref<1x128xf32, #tpu.memory_space<vmem>>, vector<1x128xf32>
    %4 = vector.broadcast %3 : vector<1x128xf32> to vector<8x128xf32>
    %5 = arith.addf %2, %4 : vector<8x128xf32>
    %cst_5 = arith.constant dense<0xFF800000> : vector<8xf32>
    %6 = vector.multi_reduction <maximumf>, %5, %cst_5 [1] : vector<8x128xf32> to vector<8xf32>
    %7 = vector.shape_cast %6 : vector<8xf32> to vector<8x1xf32>
    %8 = vector.broadcast %7 : vector<8x1xf32> to vector<8x128xf32>
    %9 = arith.subf %5, %8 : vector<8x128xf32>
    %10 = math.exp %9 : vector<8x128xf32>
    %cst_6 = arith.constant dense<0.000000e+00> : vector<8xf32>
    %11 = vector.multi_reduction <add>, %10, %cst_6 [1] : vector<8x128xf32> to vector<8xf32>
    %12 = vector.shape_cast %11 : vector<8xf32> to vector<8x1xf32>
    %13 = tpu.reciprocal %12 {approx = true} : vector<8x1xf32> -> vector<8x1xf32>
    %14 = arith.mulf %12, %13 : vector<8x1xf32>
    %cst_7 = arith.constant 2.000000e+00 : f32
    %15 = vector.broadcast %cst_7 : f32 to vector<8x1xf32>
    %16 = arith.subf %15, %14 : vector<8x1xf32>
    %17 = arith.mulf %13, %16 : vector<8x1xf32>
    %18 = vector.broadcast %17 : vector<8x1xf32> to vector<8x128xf32>
    %19 = arith.mulf %10, %18 : vector<8x128xf32>
    %c0_8 = arith.constant 0 : index
    %c0_9 = arith.constant 0 : index
    %20 = vector.load %arg3[%c0_8, %c0_9] : memref<8x128xf32, #tpu.memory_space<vmem>>, vector<8x128xf32>
    tpu.vector_store %arg3[%c0_8, %c0_9], %19 {strides = array<i32>} : memref<8x128xf32, #tpu.memory_space<vmem>>, vector<8x128xf32>,
    return
  }
}

</mosaic_0001>

<llo_original>
// kernel: tpu_custom_call.1
$region0: #{tpu_custom_call.1}
  #allocation0 [shape = 'u32[]', space=smem, size = 0x4, offset = 0x4, fixed_abs, tag = 'smem constant byte address 0x4 - core index']
  #allocation1 [shape = 'u32[72,128]{1,0:T(1,128)}', space=vmem, size = 0x9000, scoped, tag = 'internal scratch']
  %s0 = inlined_call_operand.hbm [shape: f32[8,128], index: 0, kind: input, shape index: {}]
  %s1 = inlined_call_operand.hbm [shape: f32[128,128], index: 1, kind: input, shape index: {}]
  %s2 = inlined_call_operand.vmem [shape: f32[1,128], index: 2, kind: input, shape index: {}]
  %s3 = inlined_call_operand.hbm [shape: f32[8,128], index: 3, kind: output, shape index: {}]
  %s4 = sld [smem:[#allocation0]]
  $region30: #{tpu_custom_call.1} parent=0
    _
  %s6 = ssub.s32 1, %s4
  %s7 = scalar_select 0, %s6, %s4
  $region1: #{tpu_custom_call.1} parent=0
    #allocation2 [shape = 'u8[4096]{0}', space=vmem, size = 0x1000, scoped, tag = 'input window, operand 0, single buffered']
    #allocation3 [shape = 's32[1]{0}', space=sflag, size = 0x4, scoped, tag = 'scoped memory for tpu_custom_call.1']
    #allocation4 [shape = 's32[1]{0}', space=sflag, size = 0x4, scoped, tag = 'scoped memory for tpu_custom_call.1']
    #allocation5 [shape = 'u8[65536]{0}', space=vmem, size = 0x10000, scoped, tag = 'input window, operand 1, single buffered']
    #allocation6 [shape = 's32[1]{0}', space=sflag, size = 0x4, scoped, tag = 'scoped memory for tpu_custom_call.1']
    #allocation7 [shape = 'u8[4096]{0}', space=vmem, size = 0x1000, scoped, tag = 'output window, operand 0, single buffered']
    %8 = vsyncpa [#allocation3], 0
    %9 = vsyncpa [#allocation6], 0
    %10 = vsyncpa [#allocation4], 0
    // Predicated region
    $region2: #{tpu_custom_call.1} parent=1 // pred_check
      _
    $region3: #{tpu_custom_call.1} parent=1 // pred_check_branch
      %12 = sbr.rel (0) target = $region5
    $region4: #{tpu_custom_call.1} parent=1 // pred_region
      %14 = vsyncadd [#allocation3], 0
      %s16 = sshll.u32 %s0, 4
      %s17 = int_to_ptr.hbm [resolvable:$true] %s16
      %s18 = sshll.u32 [#allocation2], 4
      %s19 = int_to_ptr.vmem [resolvable:$true] %s18
      %21 = dma.hbm_to_vmem [thread:$0]  %s17, 128, %s19, [#allocation3]
    $region5: #{tpu_custom_call.1} parent=1 // pred_fallthru
      _
    // Predicated region
    $region6: #{tpu_custom_call.1} parent=1 // pred_check
      _
    $region7: #{tpu_custom_call.1} parent=1 // pred_check_branch
      %23 = sbr.rel (0) target = $region9
    $region8: #{tpu_custom_call.1} parent=1 // pred_region
      %25 = vsyncadd [#allocation6], 0
      %s26 = sshll.u32 %s1, 4
      %s27 = int_to_ptr.hbm [resolvable:$true] %s26
      %s28 = sshll.u32 [#allocation5], 4
      %s29 = int_to_ptr.vmem [resolvable:$true] %s28
      %34 = dma.hbm_to_vmem [thread:$0]  %s27, 2048, %s29, [#allocation6], 128, 128, 8
    $region9: #{tpu_custom_call.1} parent=1 // pred_fallthru
      _
    // Predicated region
    $region10: #{tpu_custom_call.1} parent=1 // pred_check
      _
    $region11: #{tpu_custom_call.1} parent=1 // pred_check_branch
      %36 = sbr.rel (0) target = $region13
    $region12: #{tpu_custom_call.1} parent=1 // pred_region
      _
    $region13: #{tpu_custom_call.1} parent=1 // pred_fallthru
      _
    // Predicated region
    $region14: #{tpu_custom_call.1} parent=1 // pred_check
      _
    $region15: #{tpu_custom_call.1} parent=1 // pred_check_branch
      %38 = sbr.rel (0) target = $region17
    $region16: #{tpu_custom_call.1} parent=1 // pred_region
      %40 = dma.done [#allocation3], 128
    $region17: #{tpu_custom_call.1} parent=1 // pred_fallthru
      _
    // Predicated region
    $region18: #{tpu_custom_call.1} parent=1 // pred_check
      _
    $region19: #{tpu_custom_call.1} parent=1 // pred_check_branch
      %42 = sbr.rel (0) target = $region21
    $region20: #{tpu_custom_call.1} parent=1 // pred_region
      %44 = dma.done [#allocation6], 2048
    $region21: #{tpu_custom_call.1} parent=1 // pred_fallthru
      _
    %v45 = vld [vmem:[#allocation2] sm:$0xff]
    %v46 = vld [vmem:[#allocation5] sm:$0xff]
    %v47 = vld [vmem:[#allocation5 + $0x8] sm:$0xff]
    %v48 = vld [vmem:[#allocation5 + $0x10] sm:$0xff]
    %v49 = vld [vmem:[#allocation5 + $0x18] sm:$0xff]
    %v50 = vld [vmem:[#allocation5 + $0x20] sm:$0xff]
    %v51 = vld [vmem:[#allocation5 + $0x28] sm:$0xff]
    %v52 = vld [vmem:[#allocation5 + $0x30] sm:$0xff]
    %v53 = vld [vmem:[#allocation5 + $0x38] sm:$0xff]
    %v54 = vld [vmem:[#allocation5 + $0x40] sm:$0xff]
    %v55 = vld [vmem:[#allocation5 + $0x48] sm:$0xff]
    %v56 = vld [vmem:[#allocation5 + $0x50] sm:$0xff]
    %v57 = vld [vmem:[#allocation5 + $0x58] sm:$0xff]
    %v58 = vld [vmem:[#allocation5 + $0x60] sm:$0xff]
    %v59 = vld [vmem:[#allocation5 + $0x68] sm:$0xff]
    %v60 = vld [vmem:[#allocation5 + $0x70] sm:$0xff]
    %v61 = vld [vmem:[#allocation5 + $0x78] sm:$0xff]
    %v62 = vld [vmem:[%s2] sm:$0x1]
    %v64 = vperm.slane %v62, 0
    %66 = vmatpush.msra.mxu0 %v61
    %67 = vmatpush.msra.mxu0 %v60
    %68 = vmatpush.msra.mxu0 %v59
    %69 = vmatpush.msra.mxu0 %v58
    %70 = vmatpush.msra.mxu0 %v57
    %71 = vmatpush.msra.mxu0 %v56
    %72 = vmatpush.msra.mxu0 %v55
    %73 = vmatpush.msra.mxu0 %v54
    %74 = vmatpush.msra.mxu0 %v53
    %75 = vmatpush.msra.mxu0 %v52
    %76 = vmatpush.msra.mxu0 %v51
    %77 = vmatpush.msra.mxu0 %v50
    %78 = vmatpush.msra.mxu0 %v49
    %79 = vmatpush.msra.mxu0 %v48
    %80 = vmatpush.msra.mxu0 %v47
    %81 = vmatpush.msra.mxu0 %v46
    %82 = vmatmul.f32.gmra.mxu0 %v45
    %v83 = vpop.f32.mrf.mxu0
    %v84 = vadd.f32 %v64, %v83
    %85 = vdwg.mxu0
    %86 = vmax.xlane.f32.xlu0 %v84
    %v87 = vpop.xlane.xlu0 %86
    %v88 = vsub.f32 %v84, %v87
    %v89 = vmul.f32 %v88, 1.442695
    %v90 = vpow.pop %v89
    %91 = vadd.xlane.f32.xlu0 %v90
    %v92 = vpop.xlane.xlu0 %91
    %v93 = vrcp.pop %v92
    %v94 = vmul.f32 %v92, %v93
    %v95 = vsub.f32 2.0, %v94
    %v96 = vmul.f32 %v93, %v95
    %v97 = vmul.f32 %v90, %v96
    %98 = vst [vmem:[#allocation7] sm:$0xff] %v97
    // Predicated region
    $region22: #{tpu_custom_call.1} parent=1 // pred_check
      _
    $region23: #{tpu_custom_call.1} parent=1 // pred_check_branch
      %100 = sbr.rel (0) target = $region25
    $region24: #{tpu_custom_call.1} parent=1 // pred_region
      %102 = vsyncadd [#allocation4], 0
      %s104 = sshll.u32 [#allocation7], 4
      %s105 = int_to_ptr.vmem [resolvable:$true] %s104
      %s106 = sshll.u32 %s3, 4
      %s107 = int_to_ptr.hbm [resolvable:$true] %s106
      %109 = dma.vmem_to_hbm [thread:$0]  %s105, 128, %s107, [#allocation4]
    $region25: #{tpu_custom_call.1} parent=1 // pred_fallthru
      _
    // Predicated region
    $region26: #{tpu_custom_call.1} parent=1 // pred_check
      _
    $region27: #{tpu_custom_call.1} parent=1 // pred_check_branch
      %111 = sbr.rel (0) target = $region29
    $region28: #{tpu_custom_call.1} parent=1 // pred_region
      %113 = dma.done [#allocation4], 128
    $region29: #{tpu_custom_call.1} parent=1 // pred_fallthru
      _
    %114 = vsyncpa [#allocation3], 1
    %115 = vsyncpa [#allocation6], 1
    %116 = vsyncpa [#allocation4], 1

</llo_original>
